<compile_context>
chip_gen: v7x
topology: tpu7x:2x2x1
jax: 0.10.0
libtpu: 0.0.40
codegen_flags: <defaults>
</compile_context>

<pallas_src>
import functools

import jax
import jax.numpy as jnp
from jax import lax
from jax.experimental import pallas as pl
from jax.experimental.pallas import tpu as pltpu


def _project_kernel(x_ref, w_ref, b_ref, z_ref):
    """MappingLayer: z = L2-normalize(x @ w + bias) for one row block."""
    z = jnp.dot(x_ref[...].astype(jnp.float32), w_ref[...].astype(jnp.float32),
                preferred_element_type=jnp.float32) + b_ref[...].astype(jnp.float32)
    z_ref[...] = z * lax.rsqrt(jnp.sum(z * z, axis=-1, keepdims=True))


def _a2a_tiled_kernel(z_ref, zpos_ref, zt_ref, o_ref, *, temperature):
    """Per-row loss_i = log(sum_{j!=i} exp(S_ij)) - S[i, (i+B//2)%B], S = 2*cos/T.

    z_ref   : (bm, C)  normalized rows handled by this block.
    zpos_ref: (bm, C)  normalized rows of the positive pairs (B/2-shifted block).
    zt_ref  : (C, B)   all normalized rows, transposed (lane-dense columns).
    o_ref   : (bm, 1)  per-row loss contributions.
    """
    scale = 2.0 / temperature            # S = 2*cos/T; also max(S) since cos <= 1
    zr = z_ref[...]
    # (bm, B) block of S: plain (M,K)@(K,N) MXU matmul, no transpose in the loop.
    s = jnp.dot(zr, zt_ref[...], preferred_element_type=jnp.float32) * scale
    # Denominator over j != i in log domain.  exp is shifted by the analytic
    # bound `scale` so it never overflows (fixed shift can underflow only for
    # T << 0.1; fine at the module default T = 0.2).  The diagonal term is
    # exp(S_ii - scale) == 1 because rows are unit-norm (exact up to f32
    # rounding), so excluding j == i is a "- 1.0" instead of a (bm,B) select.
    denom = jnp.sum(jnp.exp(s - scale), axis=-1, keepdims=True) - 1.0
    log_bottom = scale + jnp.log(denom)
    # Positive pair arrives as an aligned row block -> (bm, C) multiply+reduce.
    top = scale * jnp.sum(zr * zpos_ref[...], axis=-1, keepdims=True)
    o_ref[...] = log_bottom - top


def _a2a_fused_kernel(x_ref, w_ref, b_ref, o_ref, *, temperature, bsz):
    """Single-shot path: projection + loss + final reduction in one kernel."""
    x = x_ref[...].astype(jnp.float32)
    w = w_ref[...].astype(jnp.float32)
    b = b_ref[...].astype(jnp.float32)
    z = jnp.dot(x, w, preferred_element_type=jnp.float32) + b
    z = z * lax.rsqrt(jnp.sum(z * z, axis=-1, keepdims=True))

    scale = 2.0 / temperature
    s = lax.dot_general(z, z, (((1,), (1,)), ((), ())),
                        preferred_element_type=jnp.float32) * scale

    # Launch-latency-bound path: keep exact iota-based selection (the row/col
    # iotas are needed for the positive pair anyway; VPU cost is irrelevant).
    row = lax.broadcasted_iota(jnp.int32, (bsz, bsz), 0)
    col = lax.broadcasted_iota(jnp.int32, (bsz, bsz), 1)
    pos = row + (bsz // 2)
    pos = jnp.where(pos >= bsz, pos - bsz, pos)                   # (i + b//2) % b
    top = jnp.sum(jnp.where(col == pos, s, 0.0), axis=-1, keepdims=True)

    e = jnp.where(col == row, 0.0, jnp.exp(s - scale))            # exact diag mask
    log_bottom = scale + jnp.log(jnp.sum(e, axis=-1, keepdims=True))

    per_row = log_bottom - top                                    # (bsz, 1)
    o_ref[...] = jnp.sum(per_row, axis=0, keepdims=True) * (1.0 / (bsz - 1))


def _pick_row_block(bsz, row_block):
    """Largest multiple-of-8 block <= row_block that tiles B//2 (and hence B)."""
    if bsz <= row_block or bsz % 2 != 0:
        return 0
    half = bsz // 2
    cand = min(row_block, half)
    cand -= cand % 8
    while cand >= 8 and half % cand != 0:
        cand -= 8
    return cand if cand >= 8 else 0


def anchor2anchor_sim_loss(anchor_features, w, bias, temperature=0.2,
                           row_block=256):
    """anchor_features: (B, Cin), w: (Cin, Cout), bias: (1, Cout) -> scalar loss."""
    bsz, in_c = anchor_features.shape
    out_c = w.shape[1]

    bm = _pick_row_block(bsz, row_block)
    if bm == 0:
        # Small batch (or no clean tiling): one fused invocation, everything in
        # VMEM, scalar output -> no trailing XLA reduction on the launch-bound path.
        # TODO(synk): a huge batch with an awkward size (odd B, or B//2 with no
        #             multiple-of-8 divisor) falls through here and needs
        #             O(B^2) VMEM; add an iota-masked tiled fallback if needed.
        kernel = functools.partial(_a2a_fused_kernel, temperature=temperature,
                                   bsz=bsz)
        loss = pl.pallas_call(
            kernel,
            out_shape=jax.ShapeDtypeStruct((1, 1), jnp.float32),
            in_specs=[pl.BlockSpec(memory_space=pltpu.MemorySpace.VMEM)] * 3,
            out_specs=pl.BlockSpec(memory_space=pltpu.MemorySpace.VMEM),
            cost_estimate=pl.CostEstimate(
                flops=2 * bsz * in_c * out_c + 2 * bsz * bsz * out_c,
                transcendentals=bsz * bsz + 2 * bsz,
                bytes_accessed=4 * (bsz * in_c + in_c * out_c + out_c + 1)),
        )(anchor_features, w, bias)
        return loss[0, 0]

    nb = bsz // bm            # even by construction (bm divides B//2)
    half_blocks = nb // 2

    # --- 1) Projection head, hoisted out of the O(B^2) loop (row-tiled). ---
    z = pl.pallas_call(
        _project_kernel,
        out_shape=jax.ShapeDtypeStruct((bsz, out_c), jnp.float32),
        grid=(nb,),
        in_specs=[
            pl.BlockSpec((bm, in_c), lambda i: (i, 0)),
            pl.BlockSpec((in_c, out_c), lambda i: (0, 0)),
            pl.BlockSpec((1, out_c), lambda i: (0, 0)),
        ],
        out_specs=pl.BlockSpec((bm, out_c), lambda i: (i, 0)),
        compiler_params=pltpu.CompilerParams(dimension_semantics=("parallel",)),
        cost_estimate=pl.CostEstimate(
            flops=2 * bsz * in_c * out_c,
            transcendentals=bsz,
            bytes_accessed=4 * (bsz * in_c + in_c * out_c + out_c + bsz * out_c)),
    )(anchor_features, w, bias)

    # Column operand in (K, N) form, lane-dense over B (one XLA transpose,
    # outside the grid loop -> no relayout/vxpose inside the hot kernel).
    z_t = z.T

    # VMEM budget: resident z_t (+ default double-buffer), the two (bm, C) row
    # blocks, and (bm, B) f32 intermediates.  Raise v5e's 16 MiB scoped default
    # but stay <= 64 MiB so the same setting is v7x-safe.
    vmem_est = 4 * (2 * out_c * bsz + 4 * bm * out_c + 4 * bm * bsz + 2 * bm)
    vmem_limit = int(min(max(vmem_est, 32 * 1024 * 1024), 64 * 1024 * 1024))

    # --- 2) Row-tiled loss kernel over (bm, B) blocks of S. ---
    per_row = pl.pallas_call(
        functools.partial(_a2a_tiled_kernel, temperature=temperature),
        out_shape=jax.ShapeDtypeStruct((bsz, 1), jnp.float32),
        grid=(nb,),
        in_specs=[
            pl.BlockSpec((bm, out_c), lambda i: (i, 0)),                       # rows i
            pl.BlockSpec((bm, out_c), lambda i: ((i + half_blocks) % nb, 0)),  # rows (i+B/2)%B
            pl.BlockSpec((out_c, bsz), lambda i: (0, 0)),                      # all columns
        ],
        out_specs=pl.BlockSpec((bm, 1), lambda i: (i, 0)),
        compiler_params=pltpu.CompilerParams(
            dimension_semantics=("parallel",),
            vmem_limit_bytes=vmem_limit),
        cost_estimate=pl.CostEstimate(
            flops=2 * bsz * bsz * out_c + 4 * bsz * out_c,
            transcendentals=bsz * bsz + bsz,
            bytes_accessed=4 * (3 * bsz * out_c + bsz)),
    )(z, z, z_t)

    # Tiny final reduction (B adds + one scale) left to XLA; keeps the grid
    # axis free of cross-step accumulation so it can run "parallel".
    return jnp.sum(per_row) / jnp.float32(bsz - 1)


def _reference_loss_loop(x, w, bias, temperature=0.2):
    """Pure-JAX double loop mirroring the PyTorch module literally."""
    z = x @ w + bias
    z = z / jnp.linalg.norm(z, axis=-1, keepdims=True)
    sim = (z @ z.T) / temperature
    b = sim.shape[0]
    l = 0.0
    for i in range(b):
        p = (i + b // 2) % b
        top = jnp.exp(sim[i, p] + sim[p, i])
        bottom = 0.0
        for j in range(b):
            if j == i:
                continue
            bottom = bottom + jnp.exp(sim[i, j] + sim[j, i])
        l = l - jnp.log(top / bottom)
    return l / (b - 1)


def _reference_loss_vec(x, w, bias, temperature=0.2):
    """Vectorised pure-JAX reference for larger batches."""
    z = x @ w + bias
    z = z / jnp.linalg.norm(z, axis=-1, keepdims=True)
    sim = (z @ z.T) / temperature
    b = sim.shape[0]
    s = sim + sim.T
    idx = jnp.arange(b)
    top = jnp.exp(s[idx, (idx + b // 2) % b])
    bottom = jnp.sum(jnp.exp(s) * (1.0 - jnp.eye(b, dtype=s.dtype)), axis=-1)
    return -jnp.sum(jnp.log(top / bottom)) / (b - 1)


if __name__ == "__main__":
    T = 0.2
    k0, k1, k2, k3, k4, k5 = jax.random.split(jax.random.PRNGKey(0), 6)

    # ---- small shape (module default in_c=128): exercises the fused path ----
    B, IN_C, OUT_C = 8, 128, 128
    x = jax.random.normal(k0, (B, IN_C), dtype=jnp.float32)
    w = jax.random.normal(k1, (IN_C, OUT_C), dtype=jnp.float32) / jnp.sqrt(IN_C)
    bias = jax.random.normal(k2, (1, OUT_C), dtype=jnp.float32) * 0.01

    loss = jax.block_until_ready(anchor2anchor_sim_loss(x, w, bias, temperature=T))
    ref = _reference_loss_loop(x, w, bias, temperature=T)
    assert jnp.allclose(loss, ref, rtol=1e-4, atol=1e-4), (loss, ref)

    # ---- larger batch: exercises projection + row-tiled "parallel" grid path ----
    B2 = 256
    x2 = jax.random.normal(k3, (B2, IN_C), dtype=jnp.float32)
    w2 = jax.random.normal(k4, (IN_C, OUT_C), dtype=jnp.float32) / jnp.sqrt(IN_C)
    bias2 = jax.random.normal(k5, (1, OUT_C), dtype=jnp.float32) * 0.01

    loss2 = jax.block_until_ready(
        anchor2anchor_sim_loss(x2, w2, bias2, temperature=T, row_block=64))
    ref2 = _reference_loss_vec(x2, w2, bias2, temperature=T)
    # slightly looser: matmul rounding + unit-norm diagonal identity over a
    # 256-wide sim block
    assert jnp.allclose(loss2, ref2, rtol=1e-3, atol=1e-3), (loss2, ref2)

    print("KERNEL_OK")
</pallas_src>

<mosaic_0001>
module attributes {stable_mosaic.version = 11 : i64} {
  func.func @_a2a_fused_kernel(%arg0: memref<8x128xf32, #tpu.memory_space<vmem>>, %arg1: memref<128x128xf32, #tpu.memory_space<vmem>>, %arg2: memref<1x128xf32, #tpu.memory_space<vmem>>, %arg3: memref<1x1xf32, #tpu.memory_space<vmem>>) attributes {dimension_semantics = [], scalar_prefetch = 0 : i64, scratch_operands = 0 : i64, tpu.core_type = #tpu.core_type<tc>} {
    %c0 = arith.constant 0 : index
    %c0_0 = arith.constant 0 : index
    %0 = vector.load %arg0[%c0, %c0_0] : memref<8x128xf32, #tpu.memory_space<vmem>>, vector<8x128xf32>
    %c0_1 = arith.constant 0 : index
    %c0_2 = arith.constant 0 : index
    %1 = vector.load %arg1[%c0_1, %c0_2] : memref<128x128xf32, #tpu.memory_space<vmem>>, vector<128x128xf32>
    %c0_3 = arith.constant 0 : index
    %c0_4 = arith.constant 0 : index
    %2 = vector.load %arg2[%c0_3, %c0_4] : memref<1x128xf32, #tpu.memory_space<vmem>>, vector<1x128xf32>
    %cst = arith.constant dense<0.000000e+00> : vector<8x128xf32>
    %3 = tpu.matmul %0, %1, %cst {dimension_numbers = #tpu.dot_dimension_numbers<[1], [0], [0], [1], [0, 0, 1, 1], [], []>} : vector<8x128xf32>, vector<128x128xf32>, vector<8x128xf32> -> vector<8x128xf32>
    %4 = vector.broadcast %2 : vector<1x128xf32> to vector<8x128xf32>
    %5 = arith.addf %3, %4 : vector<8x128xf32>
    %6 = arith.mulf %5, %5 : vector<8x128xf32>
    %cst_5 = arith.constant dense<0.000000e+00> : vector<8xf32>
    %7 = vector.multi_reduction <add>, %6, %cst_5 [1] : vector<8x128xf32> to vector<8xf32>
    %8 = vector.shape_cast %7 : vector<8xf32> to vector<8x1xf32>
    %9 = math.rsqrt %8 : vector<8x1xf32>
    %10 = vector.broadcast %9 : vector<8x1xf32> to vector<8x128xf32>
    %11 = arith.mulf %5, %10 : vector<8x128xf32>
    %cst_6 = arith.constant dense<0.000000e+00> : vector<8x8xf32>
    %12 = tpu.matmul %11, %11, %cst_6 {dimension_numbers = #tpu.dot_dimension_numbers<[1], [1], [0], [0], [0, 0, 1, 0], [], []>} : vector<8x128xf32>, vector<8x128xf32>, vector<8x8xf32> -> vector<8x8xf32>
    %cst_7 = arith.constant 1.000000e+01 : f32
    %13 = vector.broadcast %cst_7 : f32 to vector<8x8xf32>
    %14 = arith.mulf %12, %13 : vector<8x8xf32>
    %15 = tpu.iota {dimensions = array<i32: 0>} : vector<8x8xi32>
    %16 = tpu.iota {dimensions = array<i32: 1>} : vector<8x8xi32>
    %c4_i32 = arith.constant 4 : i32
    %17 = vector.broadcast %c4_i32 : i32 to vector<8x8xi32>
    %18 = arith.addi %15, %17 : vector<8x8xi32>
    %c8_i32 = arith.constant 8 : i32
    %19 = vector.broadcast %c8_i32 : i32 to vector<8x8xi32>
    %20 = arith.cmpi sge, %18, %19 : vector<8x8xi32>
    %c8_i32_8 = arith.constant 8 : i32
    %21 = vector.broadcast %c8_i32_8 : i32 to vector<8x8xi32>
    %22 = arith.subi %18, %21 : vector<8x8xi32>
    %23 = arith.select %20, %22, %18 : vector<8x8xi1>, vector<8x8xi32>
    %24 = arith.cmpi eq, %16, %23 : vector<8x8xi32>
    %cst_9 = arith.constant 0.000000e+00 : f32
    %25 = vector.broadcast %cst_9 : f32 to vector<8x8xf32>
    %26 = arith.select %24, %14, %25 : vector<8x8xi1>, vector<8x8xf32>
    %cst_10 = arith.constant dense<0.000000e+00> : vector<8xf32>
    %27 = vector.multi_reduction <add>, %26, %cst_10 [1] : vector<8x8xf32> to vector<8xf32>
    %28 = vector.shape_cast %27 : vector<8xf32> to vector<8x1xf32>
    %29 = arith.cmpi eq, %16, %15 : vector<8x8xi32>
    %cst_11 = arith.constant 1.000000e+01 : f32
    %30 = vector.broadcast %cst_11 : f32 to vector<8x8xf32>
    %31 = arith.subf %14, %30 : vector<8x8xf32>
    %32 = math.exp %31 : vector<8x8xf32>
    %cst_12 = arith.constant 0.000000e+00 : f32
    %33 = vector.broadcast %cst_12 : f32 to vector<8x8xf32>
    %34 = arith.select %29, %33, %32 : vector<8x8xi1>, vector<8x8xf32>
    %cst_13 = arith.constant dense<0.000000e+00> : vector<8xf32>
    %35 = vector.multi_reduction <add>, %34, %cst_13 [1] : vector<8x8xf32> to vector<8xf32>
    %36 = vector.shape_cast %35 : vector<8xf32> to vector<8x1xf32>
    %37 = math.log %36 : vector<8x1xf32>
    %cst_14 = arith.constant 1.000000e+01 : f32
    %38 = vector.broadcast %cst_14 : f32 to vector<8x1xf32>
    %39 = arith.addf %38, %37 : vector<8x1xf32>
    %40 = arith.subf %39, %28 : vector<8x1xf32>
    %cst_15 = arith.constant dense<0.000000e+00> : vector<1xf32>
    %41 = vector.multi_reduction <add>, %40, %cst_15 [0] : vector<8x1xf32> to vector<1xf32>
    %42 = vector.shape_cast %41 : vector<1xf32> to vector<1x1xf32>
    %cst_16 = arith.constant 0.142857149 : f32
    %43 = vector.broadcast %cst_16 : f32 to vector<1x1xf32>
    %44 = arith.mulf %42, %43 : vector<1x1xf32>
    %c0_17 = arith.constant 0 : index
    %c0_18 = arith.constant 0 : index
    %45 = vector.load %arg3[%c0_17, %c0_18] : memref<1x1xf32, #tpu.memory_space<vmem>>, vector<1x1xf32>
    tpu.vector_store %arg3[%c0_17, %c0_18], %44 {strides = array<i32>} : memref<1x1xf32, #tpu.memory_space<vmem>>, vector<1x1xf32>,
    return
  }
}

</mosaic_0001>

<llo_original>
// kernel: tpu_custom_call.1
$region0: #{tpu_custom_call.1}
  #allocation0 [shape = 'u32[]', space=smem, size = 0x4, offset = 0x4, fixed_abs, tag = 'smem constant byte address 0x4 - core index']
  #allocation1 [shape = 'u32[144,128]{1,0:T(1,128)}', space=vmem, size = 0x12000, scoped, tag = 'internal scratch']
  %s0 = inlined_call_operand.hbm [shape: f32[8,128], index: 0, kind: input, shape index: {}]
  %s1 = inlined_call_operand.hbm [shape: f32[128,128], index: 1, kind: input, shape index: {}]
  %s2 = inlined_call_operand.vmem [shape: f32[1,128], index: 2, kind: input, shape index: {}]
  %s3 = inlined_call_operand.hbm [shape: f32[1,1], index: 3, kind: output, shape index: {}]
  %s4 = sld [smem:[#allocation0]]
  $region30: #{tpu_custom_call.1} parent=0
    _
  %s6 = ssub.s32 1, %s4
  %s7 = scalar_select 0, %s6, %s4
  $region1: #{tpu_custom_call.1} parent=0
    #allocation2 [shape = 'u8[4096]{0}', space=vmem, size = 0x1000, scoped, tag = 'input window, operand 0, single buffered']
    #allocation3 [shape = 's32[1]{0}', space=sflag, size = 0x4, scoped, tag = 'scoped memory for tpu_custom_call.1']
    #allocation4 [shape = 's32[1]{0}', space=sflag, size = 0x4, scoped, tag = 'scoped memory for tpu_custom_call.1']
    #allocation5 [shape = 'u8[65536]{0}', space=vmem, size = 0x10000, scoped, tag = 'input window, operand 1, single buffered']
    #allocation6 [shape = 's32[1]{0}', space=sflag, size = 0x4, scoped, tag = 'scoped memory for tpu_custom_call.1']
    #allocation7 [shape = 'u8[512]{0}', space=vmem, size = 0x400, scoped, tag = 'output window, operand 0, single buffered']
    %8 = vsyncpa [#allocation3], 0
    %9 = vsyncpa [#allocation6], 0
    %10 = vsyncpa [#allocation4], 0
    // Predicated region
    $region2: #{tpu_custom_call.1} parent=1 // pred_check
      _
    $region3: #{tpu_custom_call.1} parent=1 // pred_check_branch
      %12 = sbr.rel (0) target = $region5
    $region4: #{tpu_custom_call.1} parent=1 // pred_region
      %s14 = ssub.s32 128, 128
      %15 = vsyncadd [#allocation3], %s14
      %s17 = sshll.u32 [#allocation2], 4
      %s18 = int_to_ptr.vmem [resolvable:$true] %s17
      %20 = dma.hbm_to_vmem [thread:$0]  %s0, 128, %s18, [#allocation3]
    $region5: #{tpu_custom_call.1} parent=1 // pred_fallthru
      _
    // Predicated region
    $region6: #{tpu_custom_call.1} parent=1 // pred_check
      _
    $region7: #{tpu_custom_call.1} parent=1 // pred_check_branch
      %22 = sbr.rel (0) target = $region9
    $region8: #{tpu_custom_call.1} parent=1 // pred_region
      %s24 = ssub.s32 2048, 2048
      %25 = vsyncadd [#allocation6], %s24
      %s26 = sshll.u32 [#allocation5], 4
      %s27 = int_to_ptr.vmem [resolvable:$true] %s26
      %32 = dma.hbm_to_vmem [thread:$0]  %s1, 2048, %s27, [#allocation6], 128, 128, 8
    $region9: #{tpu_custom_call.1} parent=1 // pred_fallthru
      _
    // Predicated region
    $region10: #{tpu_custom_call.1} parent=1 // pred_check
      _
    $region11: #{tpu_custom_call.1} parent=1 // pred_check_branch
      %34 = sbr.rel (0) target = $region13
    $region12: #{tpu_custom_call.1} parent=1 // pred_region
      _
    $region13: #{tpu_custom_call.1} parent=1 // pred_fallthru
      _
    // Predicated region
    $region14: #{tpu_custom_call.1} parent=1 // pred_check
      _
    $region15: #{tpu_custom_call.1} parent=1 // pred_check_branch
      %36 = sbr.rel (0) target = $region17
    $region16: #{tpu_custom_call.1} parent=1 // pred_region
      %37 = dma.done [#allocation3], 128
    $region17: #{tpu_custom_call.1} parent=1 // pred_fallthru
      _
    // Predicated region
    $region18: #{tpu_custom_call.1} parent=1 // pred_check
      _
    $region19: #{tpu_custom_call.1} parent=1 // pred_check_branch
      %39 = sbr.rel (0) target = $region21
    $region20: #{tpu_custom_call.1} parent=1 // pred_region
      %40 = dma.done [#allocation6], 2048
    $region21: #{tpu_custom_call.1} parent=1 // pred_fallthru
      _
    %v41 = vld [vmem:[#allocation2] sm:$0xff]
    %v42 = vld [vmem:[#allocation5] sm:$0xff]
    %v43 = vld [vmem:[#allocation5 + $0x8] sm:$0xff]
    %v44 = vld [vmem:[#allocation5 + $0x10] sm:$0xff]
    %v45 = vld [vmem:[#allocation5 + $0x18] sm:$0xff]
    %v46 = vld [vmem:[#allocation5 + $0x20] sm:$0xff]
    %v47 = vld [vmem:[#allocation5 + $0x28] sm:$0xff]
    %v48 = vld [vmem:[#allocation5 + $0x30] sm:$0xff]
    %v49 = vld [vmem:[#allocation5 + $0x38] sm:$0xff]
    %v50 = vld [vmem:[#allocation5 + $0x40] sm:$0xff]
    %v51 = vld [vmem:[#allocation5 + $0x48] sm:$0xff]
    %v52 = vld [vmem:[#allocation5 + $0x50] sm:$0xff]
    %v53 = vld [vmem:[#allocation5 + $0x58] sm:$0xff]
    %v54 = vld [vmem:[#allocation5 + $0x60] sm:$0xff]
    %v55 = vld [vmem:[#allocation5 + $0x68] sm:$0xff]
    %v56 = vld [vmem:[#allocation5 + $0x70] sm:$0xff]
    %v57 = vld [vmem:[#allocation5 + $0x78] sm:$0xff]
    %v58 = vld [vmem:[%s2] sm:$0x1]
    %v60 = vlaneseq
    %v61 = vshrl.u32 %v60, 7
    %v62 = vsub.s32 0, %v61
    %v63 = vrot.slane %v58, %v62
    %65 = vmatprep.subr.mxu0 0.0
    %66 = vmatpush1.msra.mxu0 %v42
    %67 = vmatprep.subr.mxu0 0.0
    %68 = vmatpush1.msra.mxu0 %v43
    %69 = vmatprep.subr.mxu0 0.0
    %70 = vmatpush1.msra.mxu0 %v44
    %71 = vmatprep.subr.mxu0 0.0
    %72 = vmatpush1.msra.mxu0 %v45
    %73 = vmatprep.subr.mxu0 0.0
    %74 = vmatpush1.msra.mxu0 %v46
    %75 = vmatprep.subr.mxu0 0.0
    %76 = vmatpush1.msra.mxu0 %v47
    %77 = vmatprep.subr.mxu0 0.0
    %78 = vmatpush1.msra.mxu0 %v48
    %79 = vmatprep.subr.mxu0 0.0
    %80 = vmatpush1.msra.mxu0 %v49
    %81 = vmatprep.subr.mxu0 0.0
    %82 = vmatpush1.msra.mxu0 %v50
    %83 = vmatprep.subr.mxu0 0.0
    %84 = vmatpush1.msra.mxu0 %v51
    %85 = vmatprep.subr.mxu0 0.0
    %86 = vmatpush1.msra.mxu0 %v52
    %87 = vmatprep.subr.mxu0 0.0
    %88 = vmatpush1.msra.mxu0 %v53
    %89 = vmatprep.subr.mxu0 0.0
    %90 = vmatpush1.msra.mxu0 %v54
    %91 = vmatprep.subr.mxu0 0.0
    %92 = vmatpush1.msra.mxu0 %v55
    %93 = vmatprep.subr.mxu0 0.0
    %94 = vmatpush1.msra.mxu0 %v56
    %95 = vmatprep.subr.mxu0 0.0
    %96 = vmatpush1.msra.mxu0 %v57
    %97 = vmatprep.subr.mxu0 0.0
    %98 = vmatpush1.msra.mxu0 0.0
    %99 = vmatprep.subr.mxu0 0.0
    %100 = vmatpush1.msra.mxu0 0.0
    %101 = vmatprep.subr.mxu0 0.0
    %102 = vmatpush1.msra.mxu0 0.0
    %103 = vmatprep.subr.mxu0 0.0
    %104 = vmatpush1.msra.mxu0 0.0
    %105 = vmatprep.subr.mxu0 0.0
    %106 = vmatpush1.msra.mxu0 0.0
    %107 = vmatprep.subr.mxu0 0.0
    %108 = vmatpush1.msra.mxu0 0.0
    %109 = vmatprep.subr.mxu0 0.0
    %110 = vmatpush1.msra.mxu0 0.0
    %111 = vmatprep.subr.mxu0 0.0
    %112 = vmatpush1.msra.mxu0 0.0
    %113 = vmatprep.subr.mxu0 0.0
    %114 = vmatpush1.msra.mxu0 0.0
    %115 = vmatprep.subr.mxu0 0.0
    %116 = vmatpush1.msra.mxu0 0.0
    %117 = vmatprep.subr.mxu0 0.0
    %118 = vmatpush1.msra.mxu0 0.0
    %119 = vmatprep.subr.mxu0 0.0
    %120 = vmatpush1.msra.mxu0 0.0
    %121 = vmatprep.subr.mxu0 0.0
    %122 = vmatpush1.msra.mxu0 0.0
    %123 = vmatprep.subr.mxu0 0.0
    %124 = vmatpush1.msra.mxu0 0.0
    %125 = vmatprep.subr.mxu0 0.0
    %126 = vmatpush1.msra.mxu0 0.0
    %127 = vmatprep.subr.mxu0 0.0
    %128 = vmatpush1.msra.mxu0 0.0
    %129 = vmatprep.mubr.f32.mxu0 0.0
    %130 = vmatmul.mubr.f32.gmra.mrb[0].mxu0 %v41
    %v131 = vpop.f32.mrb[0].mxu0
    %v132 = vadd.f32 %v63, %v131
    %v133 = vpop.f32.mrb[0].mxu0
    %134 = vdwg.mxu0
    %v135 = vmul.f32 %v132, %v132
    %136 = vadd.xlane.f32.xlu0 %v135
    %v137 = vpop.xlane.xlu0 %136
    %v138 = vrsqrt.pop %v137
    %v139 = vmul.f32 %v132, %v138
    %140 = vmatprep.subr.mxu0 0.0
    %141 = vmatpush1.xpose.msra.mxu0 %v139
    %142 = vmatprep.subr.mxu0 0.0
    %143 = vmatpush1.xpose.msra.mxu0 0.0
    %144 = vmatprep.subr.mxu0 0.0
    %145 = vmatpush1.xpose.msra.mxu0 0.0
    %146 = vmatprep.subr.mxu0 0.0
    %147 = vmatpush1.xpose.msra.mxu0 0.0
    %148 = vmatprep.subr.mxu0 0.0
    %149 = vmatpush1.xpose.msra.mxu0 0.0
    %150 = vmatprep.subr.mxu0 0.0
    %151 = vmatpush1.xpose.msra.mxu0 0.0
    %152 = vmatprep.subr.mxu0 0.0
    %153 = vmatpush1.xpose.msra.mxu0 0.0
    %154 = vmatprep.subr.mxu0 0.0
    %155 = vmatpush1.xpose.msra.mxu0 0.0
    %156 = vmatprep.subr.mxu0 0.0
    %157 = vmatpush1.xpose.msra.mxu0 0.0
    %158 = vmatprep.subr.mxu0 0.0
    %159 = vmatpush1.xpose.msra.mxu0 0.0
    %160 = vmatprep.subr.mxu0 0.0
    %161 = vmatpush1.xpose.msra.mxu0 0.0
    %162 = vmatprep.subr.mxu0 0.0
    %163 = vmatpush1.xpose.msra.mxu0 0.0
    %164 = vmatprep.subr.mxu0 0.0
    %165 = vmatpush1.xpose.msra.mxu0 0.0
    %166 = vmatprep.subr.mxu0 0.0
    %167 = vmatpush1.xpose.msra.mxu0 0.0
    %168 = vmatprep.subr.mxu0 0.0
    %169 = vmatpush1.xpose.msra.mxu0 0.0
    %170 = vmatprep.subr.mxu0 0.0
    %171 = vmatpush1.xpose.msra.mxu0 0.0
    %172 = vmatprep.subr.mxu0 0.0
    %173 = vmatpush1.xpose.msra.mxu0 0.0
    %174 = vmatprep.subr.mxu0 0.0
    %175 = vmatpush1.xpose.msra.mxu0 0.0
    %176 = vmatprep.subr.mxu0 0.0
    %177 = vmatpush1.xpose.msra.mxu0 0.0
    %178 = vmatprep.subr.mxu0 0.0
    %179 = vmatpush1.xpose.msra.mxu0 0.0
    %180 = vmatprep.subr.mxu0 0.0
    %181 = vmatpush1.xpose.msra.mxu0 0.0
    %182 = vmatprep.subr.mxu0 0.0
    %183 = vmatpush1.xpose.msra.mxu0 0.0
    %184 = vmatprep.subr.mxu0 0.0
    %185 = vmatpush1.xpose.msra.mxu0 0.0
    %186 = vmatprep.subr.mxu0 0.0
    %187 = vmatpush1.xpose.msra.mxu0 0.0
    %188 = vmatprep.subr.mxu0 0.0
    %189 = vmatpush1.xpose.msra.mxu0 0.0
    %190 = vmatprep.subr.mxu0 0.0
    %191 = vmatpush1.xpose.msra.mxu0 0.0
    %192 = vmatprep.subr.mxu0 0.0
    %193 = vmatpush1.xpose.msra.mxu0 0.0
    %194 = vmatprep.subr.mxu0 0.0
    %195 = vmatpush1.xpose.msra.mxu0 0.0
    %196 = vmatprep.subr.mxu0 0.0
    %197 = vmatpush1.xpose.msra.mxu0 0.0
    %198 = vmatprep.subr.mxu0 0.0
    %199 = vmatpush1.xpose.msra.mxu0 0.0
    %200 = vmatprep.subr.mxu0 0.0
    %201 = vmatpush1.xpose.msra.mxu0 0.0
    %202 = vmatprep.subr.mxu0 0.0
    %203 = vmatpush1.xpose.msra.mxu0 0.0
    %204 = vmatprep.mubr.f32.mxu0 0.0
    %205 = vmatmul.mubr.f32.gmra.mrb[0].mxu0 %v139
    %v206 = vpop.f32.mrb[0].mxu0
    %v207 = vadd.f32 0.0, %v206
    %v208 = vpop.f32.mrb[0].mxu0
    %209 = vdwg.mxu0
    %v210 = vmul.f32 %v207, 10.0
    %v211 = vlaneseq
    %v212 = vshrl.u32 %v211, 7
    %v213 = vlaneseq
    %v214 = vand.u32 %v213, 127
    %v215 = vadd.s32 %v212, 4
    %vm216 = vcmp.ge.s32.totalorder %v215, 8
    %v217 = vsub.s32 %v215, 8
    %v218 = vsel %vm216, %v217, %v215
    %vm219 = vcmp.eq.s32.totalorder %v214, %v218
    %v220 = vsel %vm219, %v210, 0.0
    %vm221 = vcmask 64512
    %v222 = vsel %vm221, %v220, 0.0
    %223 = vadd.xlane.f32.xlu0 %v222
    %v224 = vpop.xlane.xlu0 %223
    %vm225 = vcmp.eq.s32.totalorder %v214, %v212
    %v226 = vsub.f32 %v210, 10.0
    %v227 = vmul.f32 %v226, 1.442695
    %v228 = vpow.pop %v227
    %v229 = vsel %vm225, 0.0, %v228
    %v230 = vsel %vm221, %v229, 0.0
    %231 = vadd.xlane.f32.xlu0 %v230
    %v232 = vpop.xlane.xlu0 %231
    %v233 = vlog2.pop %v232
    %v234 = vmul.f32 %v233, 0.6931472
    %v235 = vadd.f32 %v234, 10.0
    %v236 = vsub.f32 %v235, %v224
    %v237 = vrot.slane %v236, 4
    %v238 = vadd.f32 %v236, %v237
    %v239 = vrot.slane %v238, 2
    %v240 = vadd.f32 %v238, %v239
    %v241 = vrot.slane %v240, 1
    %v242 = vadd.f32 %v240, %v241
    %v243 = vmul.f32 %v242, 0.14285715
    %vm244 = vcmask 0
    %245 = vst.msk [vmem:[#allocation7] sm:$0x1] %vm244, %v243
    // Predicated region
    $region22: #{tpu_custom_call.1} parent=1 // pred_check
      _
    $region23: #{tpu_custom_call.1} parent=1 // pred_check_branch
      %247 = sbr.rel (0) target = $region25
    $region24: #{tpu_custom_call.1} parent=1 // pred_region
      %s249 = ssub.s32 16, 16
      %250 = vsyncadd [#allocation4], %s249
      %s252 = sshll.u32 [#allocation7], 4
      %s253 = int_to_ptr.vmem [resolvable:$true] %s252
      %255 = dma.vmem_to_hbm [thread:$0]  %s253, 16, %s3, [#allocation4]
    $region25: #{tpu_custom_call.1} parent=1 // pred_fallthru
      _
    // Predicated region
    $region26: #{tpu_custom_call.1} parent=1 // pred_check
      _
    $region27: #{tpu_custom_call.1} parent=1 // pred_check_branch
      %257 = sbr.rel (0) target = $region29
    $region28: #{tpu_custom_call.1} parent=1 // pred_region
      %258 = dma.done [#allocation4], 16
    $region29: #{tpu_custom_call.1} parent=1 // pred_fallthru
      _
    %259 = vsyncpa [#allocation3], 1
    %260 = vsyncpa [#allocation6], 1
    %261 = vsyncpa [#allocation4], 1

</llo_original>
